<compile_context>
chip_gen: v7x
topology: tpu7x:2x2x1
jax: 0.10.0
libtpu: 0.0.40
codegen_flags: <defaults>
</compile_context>

<pallas_src>
import functools

import jax
import jax.numpy as jnp
from jax.experimental import pallas as pl
from jax.experimental.pallas import tpu as pltpu

BN_EPS = 1e-5
LANE = 128


# --------------------------------------------------------------------------- #
# Kernels
# --------------------------------------------------------------------------- #
def _bn_scale_shift(mean, mean_sq, gamma, beta):
    """Fold BatchNorm (batch stats) + affine into one scale/shift pair."""
    # Clamp: single-pass E[h^2]-mean^2 can go slightly negative in f32.
    var = jnp.maximum(mean_sq - mean * mean, 0.0)
    scale = jax.lax.rsqrt(var + BN_EPS) * gamma
    shift = beta - mean * scale
    return scale, shift


def _fused_kernel(x_ref, w1gb_ref, w2p_ref, o_ref):
    """Single-program path: whole batch resident in VMEM."""
    in_dim = x_ref.shape[-1]
    x = x_ref[...]                                                   # (N, in)
    # Linear(in -> hidden). Bias is intentionally omitted: a per-feature
    # constant before training-mode BatchNorm is cancelled by the mean
    # subtraction and leaves the variance unchanged.
    h = jnp.dot(x, w1gb_ref[0:in_dim, :],
                preferred_element_type=jnp.float32)                  # (N, H)

    inv_n = 1.0 / h.shape[0]
    mean = jnp.sum(h, axis=0, keepdims=True) * inv_n                 # (1, H)
    mean_sq = jnp.sum(h * h, axis=0, keepdims=True) * inv_n          # (1, H)
    scale, shift = _bn_scale_shift(mean, mean_sq,
                                   w1gb_ref[in_dim:in_dim + 1, :],
                                   w1gb_ref[in_dim + 1:in_dim + 2, :])

    h_act = jnp.maximum(h * scale + shift, 0.0)                      # BN + ReLU
    # Linear(hidden -> out_pad, bias=False); out_pad is lane-dense (128*k).
    o_ref[...] = jnp.dot(h_act, w2p_ref[...],
                         preferred_element_type=jnp.float32)


def _stats_kernel(x_ref, w1gb_ref, stats_ref):
    """Tiled pass 1: accumulate per-feature sum / sum(h^2) over the N grid."""
    in_dim = x_ref.shape[-1]
    i = pl.program_id(0)

    @pl.when(i == 0)
    def _():
        stats_ref[...] = jnp.zeros_like(stats_ref)

    x = x_ref[...]                                                   # (TN, in)
    h = jnp.dot(x, w1gb_ref[0:in_dim, :],
                preferred_element_type=jnp.float32)                  # (TN, H)
    # Column reductions on the MXU (keeps the XLU free): ones(1,TN) @ h.
    ones = jnp.ones((1, h.shape[0]), jnp.float32)
    stats_ref[0:1, :] += jnp.dot(ones, h, preferred_element_type=jnp.float32)
    stats_ref[1:2, :] += jnp.dot(ones, h * h,
                                 preferred_element_type=jnp.float32)


def _apply_kernel(x_ref, w1gb_ref, stats_ref, w2p_ref, o_ref, *, inv_n):
    """Tiled pass 2: recompute h per tile, BN + ReLU + second matmul."""
    in_dim = x_ref.shape[-1]
    x = x_ref[...]                                                   # (TN, in)
    h = jnp.dot(x, w1gb_ref[0:in_dim, :],
                preferred_element_type=jnp.float32)                  # (TN, H)

    mean = stats_ref[0:1, :] * inv_n
    mean_sq = stats_ref[1:2, :] * inv_n
    scale, shift = _bn_scale_shift(mean, mean_sq,
                                   w1gb_ref[in_dim:in_dim + 1, :],
                                   w1gb_ref[in_dim + 1:in_dim + 2, :])

    h_act = jnp.maximum(h * scale + shift, 0.0)
    o_ref[...] = jnp.dot(h_act, w2p_ref[...],
                         preferred_element_type=jnp.float32)


# --------------------------------------------------------------------------- #
# Wrapper
# --------------------------------------------------------------------------- #
def prepare_params(w1, b1, gamma, beta, w2):
    """One-time packing of the MLP parameters (hoisted out of the forward).

    w1: (in_dim, hidden)  -- pre-transposed from PyTorch's (out, in)
    b1: (1, hidden) or None -- accepted for API parity; dropped because a
        per-feature constant before training-mode BatchNorm cancels exactly.
        (Only valid for batch-statistics BN; eval-mode running stats would
        need the bias kept.)
    gamma, beta: (1, hidden); w2: (hidden, out_dim)

    Returns (w1gb, w2p, out_dim):
      w1gb: (in_dim + 2, hidden)  -- w1 rows, then gamma row, then beta row
      w2p : (hidden, out_pad)     -- w2 zero-padded to a multiple of 128 lanes
    """
    del b1  # mathematically a no-op under training-mode BatchNorm
    in_dim, hidden = w1.shape
    h2, out_dim = w2.shape
    assert h2 == hidden
    w1gb = jnp.concatenate(
        [w1.astype(jnp.float32),
         gamma.reshape(1, hidden).astype(jnp.float32),
         beta.reshape(1, hidden).astype(jnp.float32)], axis=0)
    out_pad = max(LANE, ((out_dim + LANE - 1) // LANE) * LANE)
    w2p = jnp.pad(w2.astype(jnp.float32), ((0, 0), (0, out_pad - out_dim)))
    return w1gb, w2p, out_dim


@functools.partial(jax.jit, static_argnames=("out_dim", "tile_n"))
def mlp_forward(x, w1gb, w2p, out_dim, tile_n=256):
    """Forward of MLP(32, (64, 32)) from packed params (see prepare_params).

    tile_n: batch-tile for the large-N path. Guidance: 256 on v6e/v7x
    (2x256x256 MXU), 128 on v5e (4x128x128 MXU). Small batches (or batches not
    divisible by tile_n) take the single fused program.
    """
    n, in_dim = x.shape
    assert n > 1, "BatchNorm1d with batch statistics needs N > 1"
    hidden = w1gb.shape[1]
    out_pad = w2p.shape[1]

    full = lambda shape: pl.BlockSpec(shape, lambda *_: tuple(0 for _ in shape))

    if tile_n is None or n <= tile_n or n % tile_n != 0:
        # ---- Small-batch path: one fused program, everything in VMEM. ----
        out_padded = pl.pallas_call(
            _fused_kernel,
            out_shape=jax.ShapeDtypeStruct((n, out_pad), jnp.float32),
            grid=(),
            in_specs=[full(x.shape), full(w1gb.shape), full(w2p.shape)],
            out_specs=full((n, out_pad)),
        )(x, w1gb, w2p)
    else:
        # ---- Tiled large-N path (two passes; BN needs full-batch stats). ----
        grid = (n // tile_n,)
        # 16 MiB fits inside every generation's scoped-VMEM default
        # (16 MiB v5e, 32 MiB v6e/v7x); actual usage is a few hundred KiB.
        vmem_limit = 16 * 1024 * 1024

        stats = pl.pallas_call(
            _stats_kernel,
            out_shape=jax.ShapeDtypeStruct((2, hidden), jnp.float32),
            grid=grid,
            in_specs=[pl.BlockSpec((tile_n, in_dim), lambda i: (i, 0)),
                      pl.BlockSpec(w1gb.shape, lambda i: (0, 0))],
            # Constant block index across the grid -> VMEM-resident accumulator.
            out_specs=pl.BlockSpec((2, hidden), lambda i: (0, 0)),
            compiler_params=pltpu.CompilerParams(
                dimension_semantics=("arbitrary",),
                vmem_limit_bytes=vmem_limit),
            cost_estimate=pl.CostEstimate(
                flops=2 * n * in_dim * hidden + 6 * n * hidden,
                transcendentals=0,
                bytes_accessed=4 * (x.size + w1gb.size + 2 * hidden)),
        )(x, w1gb)

        out_padded = pl.pallas_call(
            functools.partial(_apply_kernel, inv_n=1.0 / n),
            out_shape=jax.ShapeDtypeStruct((n, out_pad), jnp.float32),
            grid=grid,
            in_specs=[pl.BlockSpec((tile_n, in_dim), lambda i: (i, 0)),
                      pl.BlockSpec(w1gb.shape, lambda i: (0, 0)),
                      pl.BlockSpec((2, hidden), lambda i: (0, 0)),
                      pl.BlockSpec(w2p.shape, lambda i: (0, 0))],
            out_specs=pl.BlockSpec((tile_n, out_pad), lambda i: (i, 0)),
            # N tiles are independent -> "parallel" (uses v7x's 2nd TensorCore).
            compiler_params=pltpu.CompilerParams(
                dimension_semantics=("parallel",),
                vmem_limit_bytes=vmem_limit),
            cost_estimate=pl.CostEstimate(
                flops=2 * n * in_dim * hidden + 2 * n * hidden * out_pad
                      + 5 * n * hidden,
                transcendentals=hidden,
                bytes_accessed=4 * (x.size + w1gb.size + w2p.size
                                    + n * out_pad)),
        )(x, w1gb, stats, w2p)

    # Slice back to out_dim inside the same jit as the pallas_call, so it is
    # fused by XLA rather than dispatched as a standalone copy kernel.
    return out_padded[:, :out_dim]


def reference_forward(x, w1, b1, gamma, beta, w2):
    h = x @ w1 + b1
    mean = jnp.mean(h, axis=0, keepdims=True)
    var = jnp.mean((h - mean) ** 2, axis=0, keepdims=True)
    h = (h - mean) / jnp.sqrt(var + BN_EPS) * gamma + beta
    h = jnp.maximum(h, 0.0)
    return h @ w2


if __name__ == "__main__":
    in_dim, hidden, out_dim = 32, 64, 32

    key = jax.random.PRNGKey(0)
    k_x, k_w1, k_b1, k_g, k_bt, k_w2, k_x2 = jax.random.split(key, 7)

    # Deterministic synthetic parameters (PyTorch Linear weight is (out, in);
    # kernel layout is (in, out)).
    w1 = jax.random.normal(k_w1, (in_dim, hidden), dtype=jnp.float32) * 0.1
    b1 = jax.random.normal(k_b1, (1, hidden), dtype=jnp.float32) * 0.1
    gamma = 1.0 + 0.1 * jax.random.normal(k_g, (1, hidden), dtype=jnp.float32)
    beta = 0.1 * jax.random.normal(k_bt, (1, hidden), dtype=jnp.float32)
    w2 = jax.random.normal(k_w2, (hidden, out_dim), dtype=jnp.float32) * 0.1

    # One-time parameter packing (hoisted out of the per-call path).
    w1gb, w2p, od = prepare_params(w1, b1, gamma, beta, w2)

    # Small batch -> fused single-program path.
    x_small = jax.random.normal(k_x, (8, in_dim), dtype=jnp.float32)
    y_small = jax.block_until_ready(mlp_forward(x_small, w1gb, w2p, od))
    y_ref_small = reference_forward(x_small, w1, b1, gamma, beta, w2)
    assert y_small.shape == (8, out_dim)
    assert jnp.allclose(y_small, y_ref_small, atol=1e-4, rtol=1e-4)

    # Larger batch -> two-pass tiled path (parallel N grid).
    x_big = jax.random.normal(k_x2, (512, in_dim), dtype=jnp.float32)
    y_big = jax.block_until_ready(mlp_forward(x_big, w1gb, w2p, od, tile_n=128))
    y_ref_big = reference_forward(x_big, w1, b1, gamma, beta, w2)
    assert y_big.shape == (512, out_dim)
    assert jnp.allclose(y_big, y_ref_big, atol=1e-4, rtol=1e-4)

    print("KERNEL_OK")
</pallas_src>

<mosaic_0001>
module attributes {stable_mosaic.version = 11 : i64} {
  func.func @_fused_kernel(%arg0: memref<8x32xf32, #tpu.memory_space<vmem>>, %arg1: memref<34x64xf32, #tpu.memory_space<vmem>>, %arg2: memref<64x128xf32, #tpu.memory_space<vmem>>, %arg3: memref<8x128xf32, #tpu.memory_space<vmem>>) attributes {dimension_semantics = [], scalar_prefetch = 0 : i64, scratch_operands = 0 : i64, tpu.core_type = #tpu.core_type<tc>} {
    %c0 = arith.constant 0 : index
    %c0_0 = arith.constant 0 : index
    %0 = vector.load %arg0[%c0, %c0_0] : memref<8x32xf32, #tpu.memory_space<vmem>>, vector<8x32xf32>
    %c0_1 = arith.constant 0 : index
    %c0_2 = arith.constant 0 : index
    %1 = vector.load %arg1[%c0_1, %c0_2] : memref<34x64xf32, #tpu.memory_space<vmem>>, vector<32x64xf32>
    %cst = arith.constant dense<0.000000e+00> : vector<8x64xf32>
    %2 = tpu.matmul %0, %1, %cst {dimension_numbers = #tpu.dot_dimension_numbers<[1], [0], [0], [1], [0, 0, 1, 1], [], []>} : vector<8x32xf32>, vector<32x64xf32>, vector<8x64xf32> -> vector<8x64xf32>
    %cst_3 = arith.constant dense<0.000000e+00> : vector<64xf32>
    %3 = vector.multi_reduction <add>, %2, %cst_3 [0] : vector<8x64xf32> to vector<64xf32>
    %4 = vector.shape_cast %3 : vector<64xf32> to vector<1x64xf32>
    %cst_4 = arith.constant 1.250000e-01 : f32
    %5 = vector.broadcast %cst_4 : f32 to vector<1x64xf32>
    %6 = arith.mulf %4, %5 : vector<1x64xf32>
    %7 = arith.mulf %2, %2 : vector<8x64xf32>
    %cst_5 = arith.constant dense<0.000000e+00> : vector<64xf32>
    %8 = vector.multi_reduction <add>, %7, %cst_5 [0] : vector<8x64xf32> to vector<64xf32>
    %9 = vector.shape_cast %8 : vector<64xf32> to vector<1x64xf32>
    %cst_6 = arith.constant 1.250000e-01 : f32
    %10 = vector.broadcast %cst_6 : f32 to vector<1x64xf32>
    %11 = arith.mulf %9, %10 : vector<1x64xf32>
    %c32 = arith.constant 32 : index
    %c0_7 = arith.constant 0 : index
    %12 = vector.load %arg1[%c32, %c0_7] : memref<34x64xf32, #tpu.memory_space<vmem>>, vector<1x64xf32>
    %c33 = arith.constant 33 : index
    %c0_8 = arith.constant 0 : index
    %13 = vector.load %arg1[%c33, %c0_8] : memref<34x64xf32, #tpu.memory_space<vmem>>, vector<1x64xf32>
    %14 = arith.mulf %6, %6 : vector<1x64xf32>
    %15 = arith.subf %11, %14 : vector<1x64xf32>
    %cst_9 = arith.constant 0.000000e+00 : f32
    %16 = vector.broadcast %cst_9 : f32 to vector<1x64xf32>
    %17 = arith.maximumf %15, %16 : vector<1x64xf32>
    %cst_10 = arith.constant 9.99999974E-6 : f32
    %18 = vector.broadcast %cst_10 : f32 to vector<1x64xf32>
    %19 = arith.addf %17, %18 : vector<1x64xf32>
    %20 = math.rsqrt %19 : vector<1x64xf32>
    %21 = arith.mulf %20, %12 : vector<1x64xf32>
    %22 = arith.mulf %6, %21 : vector<1x64xf32>
    %23 = arith.subf %13, %22 : vector<1x64xf32>
    %24 = vector.broadcast %21 : vector<1x64xf32> to vector<8x64xf32>
    %25 = arith.mulf %2, %24 : vector<8x64xf32>
    %26 = vector.broadcast %23 : vector<1x64xf32> to vector<8x64xf32>
    %27 = arith.addf %25, %26 : vector<8x64xf32>
    %cst_11 = arith.constant 0.000000e+00 : f32
    %28 = vector.broadcast %cst_11 : f32 to vector<8x64xf32>
    %29 = arith.maximumf %27, %28 : vector<8x64xf32>
    %c0_12 = arith.constant 0 : index
    %c0_13 = arith.constant 0 : index
    %30 = vector.load %arg2[%c0_12, %c0_13] : memref<64x128xf32, #tpu.memory_space<vmem>>, vector<64x128xf32>
    %cst_14 = arith.constant dense<0.000000e+00> : vector<8x128xf32>
    %31 = tpu.matmul %29, %30, %cst_14 {dimension_numbers = #tpu.dot_dimension_numbers<[1], [0], [0], [1], [0, 0, 1, 1], [], []>} : vector<8x64xf32>, vector<64x128xf32>, vector<8x128xf32> -> vector<8x128xf32>
    %c0_15 = arith.constant 0 : index
    %c0_16 = arith.constant 0 : index
    %32 = vector.load %arg3[%c0_15, %c0_16] : memref<8x128xf32, #tpu.memory_space<vmem>>, vector<8x128xf32>
    tpu.vector_store %arg3[%c0_15, %c0_16], %31 {strides = array<i32>} : memref<8x128xf32, #tpu.memory_space<vmem>>, vector<8x128xf32>,
    return
  }
}

</mosaic_0001>

<llo_original>
// kernel: mlp_forward.1
$region0: #{mlp_forward.1}
  #allocation0 [shape = 'u32[]', space=smem, size = 0x4, offset = 0x4, fixed_abs, tag = 'smem constant byte address 0x4 - core index']
  #allocation1 [shape = 'u32[144,128]{1,0:T(1,128)}', space=vmem, size = 0x12000, scoped, tag = 'internal scratch']
  %s0 = inlined_call_operand.hbm [shape: f32[8,32], index: 0, kind: input, shape index: {}]
  %s1 = inlined_call_operand.hbm [shape: f32[34,64], index: 1, kind: input, shape index: {}]
  %s2 = inlined_call_operand.hbm [shape: f32[64,128], index: 2, kind: input, shape index: {}]
  %s3 = inlined_call_operand.hbm [shape: f32[8,128], index: 3, kind: output, shape index: {}]
  %s4 = sld [smem:[#allocation0]]
  $region34: #{mlp_forward.1} parent=0
    _
  %s6 = ssub.s32 1, %s4
  %s7 = scalar_select 0, %s6, %s4
  $region1: #{mlp_forward.1} parent=0
    #allocation2 [shape = 'u8[4096]{0}', space=vmem, size = 0x1000, scoped, tag = 'input window, operand 0, single buffered']
    #allocation3 [shape = 's32[1]{0}', space=sflag, size = 0x4, scoped, tag = 'scoped memory for mlp_forward.1']
    #allocation4 [shape = 's32[1]{0}', space=sflag, size = 0x4, scoped, tag = 'scoped memory for mlp_forward.1']
    #allocation5 [shape = 'u8[20480]{0}', space=vmem, size = 0x5000, scoped, tag = 'input window, operand 1, single buffered']
    #allocation6 [shape = 's32[1]{0}', space=sflag, size = 0x4, scoped, tag = 'scoped memory for mlp_forward.1']
    #allocation7 [shape = 'u8[32768]{0}', space=vmem, size = 0x8000, scoped, tag = 'input window, operand 2, single buffered']
    #allocation8 [shape = 'u8[4096]{0}', space=vmem, size = 0x1000, scoped, tag = 'output window, operand 0, single buffered']
    %8 = vsyncpa [#allocation3], 0
    %9 = vsyncpa [#allocation6], 0
    %10 = vsyncpa [#allocation4], 0
    // Predicated region
    $region2: #{mlp_forward.1} parent=1 // pred_check
      _
    $region3: #{mlp_forward.1} parent=1 // pred_check_branch
      %12 = sbr.rel (0) target = $region5
    $region4: #{mlp_forward.1} parent=1 // pred_region
      %s14 = ssub.s32 128, 128
      %15 = vsyncadd [#allocation3], %s14
      %s17 = sshll.u32 [#allocation2], 4
      %s18 = int_to_ptr.vmem [resolvable:$true] %s17
      %20 = dma.hbm_to_vmem [thread:$0]  %s0, 128, %s18, [#allocation3]
    $region5: #{mlp_forward.1} parent=1 // pred_fallthru
      _
    // Predicated region
    $region6: #{mlp_forward.1} parent=1 // pred_check
      _
    $region7: #{mlp_forward.1} parent=1 // pred_check_branch
      %22 = sbr.rel (0) target = $region9
    $region8: #{mlp_forward.1} parent=1 // pred_region
      %s24 = ssub.s32 640, 640
      %25 = vsyncadd [#allocation6], %s24
      %s26 = sshll.u32 [#allocation5], 4
      %s27 = int_to_ptr.vmem [resolvable:$true] %s26
      %32 = dma.hbm_to_vmem [thread:$0]  %s1, 640, %s27, [#allocation6], 128, 128, 8
    $region9: #{mlp_forward.1} parent=1 // pred_fallthru
      _
    // Predicated region
    $region10: #{mlp_forward.1} parent=1 // pred_check
      _
    $region11: #{mlp_forward.1} parent=1 // pred_check_branch
      %34 = sbr.rel (0) target = $region13
    $region12: #{mlp_forward.1} parent=1 // pred_region
      %s36 = ssub.s32 1024, 1024
      %37 = vsyncadd [#allocation6], %s36
      %s38 = sshll.u32 [#allocation7], 4
      %s39 = int_to_ptr.vmem [resolvable:$true] %s38
      %44 = dma.hbm_to_vmem [thread:$0]  %s2, 1024, %s39, [#allocation6], 128, 128, 8
    $region13: #{mlp_forward.1} parent=1 // pred_fallthru
      _
    // Predicated region
    $region14: #{mlp_forward.1} parent=1 // pred_check
      _
    $region15: #{mlp_forward.1} parent=1 // pred_check_branch
      %46 = sbr.rel (0) target = $region17
    $region16: #{mlp_forward.1} parent=1 // pred_region
      %47 = dma.done [#allocation3], 128
    $region17: #{mlp_forward.1} parent=1 // pred_fallthru
      _
    // Predicated region
    $region18: #{mlp_forward.1} parent=1 // pred_check
      _
    $region19: #{mlp_forward.1} parent=1 // pred_check_branch
      %49 = sbr.rel (0) target = $region21
    $region20: #{mlp_forward.1} parent=1 // pred_region
      %50 = dma.done [#allocation6], 640
    $region21: #{mlp_forward.1} parent=1 // pred_fallthru
      _
    // Predicated region
    $region22: #{mlp_forward.1} parent=1 // pred_check
      _
    $region23: #{mlp_forward.1} parent=1 // pred_check_branch
      %52 = sbr.rel (0) target = $region25
    $region24: #{mlp_forward.1} parent=1 // pred_region
      %53 = dma.done [#allocation6], 1024
    $region25: #{mlp_forward.1} parent=1 // pred_fallthru
      _
    %v54 = vld [vmem:[#allocation2] sm:$0xff]
    %v55 = vld [vmem:[#allocation5] sm:$0xff]
    %v56 = vld [vmem:[#allocation5 + $0x8] sm:$0xff]
    %v57 = vld [vmem:[#allocation5 + $0x10] sm:$0xff]
    %v58 = vld [vmem:[#allocation5 + $0x18] sm:$0xff]
    %vm59 = vcmask 261120
    %v61 = vsel %vm59, %v54, 0
    %63 = vmatprep.subr.mxu0 0.0
    %64 = vmatpush1.msra.mxu0 %v55
    %65 = vmatprep.subr.mxu0 0.0
    %66 = vmatpush1.msra.mxu0 %v56
    %67 = vmatprep.subr.mxu0 0.0
    %68 = vmatpush1.msra.mxu0 %v57
    %69 = vmatprep.subr.mxu0 0.0
    %70 = vmatpush1.msra.mxu0 %v58
    %71 = vmatprep.subr.mxu0 0.0
    %72 = vmatpush1.msra.mxu0 0.0
    %73 = vmatprep.subr.mxu0 0.0
    %74 = vmatpush1.msra.mxu0 0.0
    %75 = vmatprep.subr.mxu0 0.0
    %76 = vmatpush1.msra.mxu0 0.0
    %77 = vmatprep.subr.mxu0 0.0
    %78 = vmatpush1.msra.mxu0 0.0
    %79 = vmatprep.subr.mxu0 0.0
    %80 = vmatpush1.msra.mxu0 0.0
    %81 = vmatprep.subr.mxu0 0.0
    %82 = vmatpush1.msra.mxu0 0.0
    %83 = vmatprep.subr.mxu0 0.0
    %84 = vmatpush1.msra.mxu0 0.0
    %85 = vmatprep.subr.mxu0 0.0
    %86 = vmatpush1.msra.mxu0 0.0
    %87 = vmatprep.subr.mxu0 0.0
    %88 = vmatpush1.msra.mxu0 0.0
    %89 = vmatprep.subr.mxu0 0.0
    %90 = vmatpush1.msra.mxu0 0.0
    %91 = vmatprep.subr.mxu0 0.0
    %92 = vmatpush1.msra.mxu0 0.0
    %93 = vmatprep.subr.mxu0 0.0
    %94 = vmatpush1.msra.mxu0 0.0
    %95 = vmatprep.subr.mxu0 0.0
    %96 = vmatpush1.msra.mxu0 0.0
    %97 = vmatprep.subr.mxu0 0.0
    %98 = vmatpush1.msra.mxu0 0.0
    %99 = vmatprep.subr.mxu0 0.0
    %100 = vmatpush1.msra.mxu0 0.0
    %101 = vmatprep.subr.mxu0 0.0
    %102 = vmatpush1.msra.mxu0 0.0
    %103 = vmatprep.subr.mxu0 0.0
    %104 = vmatpush1.msra.mxu0 0.0
    %105 = vmatprep.subr.mxu0 0.0
    %106 = vmatpush1.msra.mxu0 0.0
    %107 = vmatprep.subr.mxu0 0.0
    %108 = vmatpush1.msra.mxu0 0.0
    %109 = vmatprep.subr.mxu0 0.0
    %110 = vmatpush1.msra.mxu0 0.0
    %111 = vmatprep.subr.mxu0 0.0
    %112 = vmatpush1.msra.mxu0 0.0
    %113 = vmatprep.subr.mxu0 0.0
    %114 = vmatpush1.msra.mxu0 0.0
    %115 = vmatprep.subr.mxu0 0.0
    %116 = vmatpush1.msra.mxu0 0.0
    %117 = vmatprep.subr.mxu0 0.0
    %118 = vmatpush1.msra.mxu0 0.0
    %119 = vmatprep.subr.mxu0 0.0
    %120 = vmatpush1.msra.mxu0 0.0
    %121 = vmatprep.subr.mxu0 0.0
    %122 = vmatpush1.msra.mxu0 0.0
    %123 = vmatprep.subr.mxu0 0.0
    %124 = vmatpush1.msra.mxu0 0.0
    %125 = vmatprep.subr.mxu0 0.0
    %126 = vmatpush1.msra.mxu0 0.0
    %127 = vmatprep.mubr.f32.mxu0 0.0
    %128 = vmatmul.mubr.f32.gmra.mrb[0].mxu0 %v61
    %v129 = vpop.f32.mrb[0].mxu0
    %v130 = vadd.f32 0.0, %v129
    %v131 = vpop.f32.mrb[0].mxu0
    %132 = vdwg.mxu0
    %vm133 = vcmask 523264
    %v134 = vsel %vm133, %v130, 0.0
    %v135 = vrot.slane %v134, 4
    %v136 = vadd.f32 %v134, %v135
    %v137 = vrot.slane %v136, 2
    %v138 = vadd.f32 %v136, %v137
    %v139 = vrot.slane %v138, 1
    %v140 = vadd.f32 %v138, %v139
    %v141 = vmul.f32 %v140, 0.125
    %v142 = vmul.f32 %v130, %v130
    %v143 = vsel %vm133, %v142, 0.0
    %v144 = vrot.slane %v143, 4
    %v145 = vadd.f32 %v143, %v144
    %v146 = vrot.slane %v145, 2
    %v147 = vadd.f32 %v145, %v146
    %v148 = vrot.slane %v147, 1
    %v149 = vadd.f32 %v147, %v148
    %v150 = vmul.f32 %v149, 0.125
    %v151 = vld [vmem:[#allocation5 + $0x20] sm:$0x1]
    %v152 = vld [vmem:[#allocation5 + $0x21] sm:$0x1]
    %v153 = vmul.f32 %v141, %v141
    %v154 = vsub.f32 %v150, %v153
    %v155 = vmax.f32 %v154, 0.0
    %v156 = vadd.f32 %v155, 1e-05
    %v157 = vrsqrt.pop %v156
    %v158 = vmul.f32 %v157, %v151
    %v159 = vmul.f32 %v141, %v158
    %v160 = vsub.f32 %v152, %v159
    %v161 = vlaneseq
    %v162 = vshrl.u32 %v161, 7
    %v163 = vsub.s32 0, %v162
    %v164 = vrot.slane %v158, %v163
    %v165 = vmul.f32 %v130, %v164
    %v166 = vlaneseq
    %v167 = vshrl.u32 %v166, 7
    %v168 = vsub.s32 0, %v167
    %v169 = vrot.slane %v160, %v168
    %v170 = vadd.f32 %v165, %v169
    %v171 = vmax.f32 %v170, 0.0
    %v172 = vld [vmem:[#allocation7] sm:$0xff]
    %v173 = vld [vmem:[#allocation7 + $0x8] sm:$0xff]
    %v174 = vld [vmem:[#allocation7 + $0x10] sm:$0xff]
    %v175 = vld [vmem:[#allocation7 + $0x18] sm:$0xff]
    %v176 = vld [vmem:[#allocation7 + $0x20] sm:$0xff]
    %v177 = vld [vmem:[#allocation7 + $0x28] sm:$0xff]
    %v178 = vld [vmem:[#allocation7 + $0x30] sm:$0xff]
    %v179 = vld [vmem:[#allocation7 + $0x38] sm:$0xff]
    %v181 = vsel %vm133, %v171, 0
    %183 = vmatprep.subr.mxu0 0.0
    %184 = vmatpush1.msra.mxu0 %v172
    %185 = vmatprep.subr.mxu0 0.0
    %186 = vmatpush1.msra.mxu0 %v173
    %187 = vmatprep.subr.mxu0 0.0
    %188 = vmatpush1.msra.mxu0 %v174
    %189 = vmatprep.subr.mxu0 0.0
    %190 = vmatpush1.msra.mxu0 %v175
    %191 = vmatprep.subr.mxu0 0.0
    %192 = vmatpush1.msra.mxu0 %v176
    %193 = vmatprep.subr.mxu0 0.0
    %194 = vmatpush1.msra.mxu0 %v177
    %195 = vmatprep.subr.mxu0 0.0
    %196 = vmatpush1.msra.mxu0 %v178
    %197 = vmatprep.subr.mxu0 0.0
    %198 = vmatpush1.msra.mxu0 %v179
    %199 = vmatprep.subr.mxu0 0.0
    %200 = vmatpush1.msra.mxu0 0.0
    %201 = vmatprep.subr.mxu0 0.0
    %202 = vmatpush1.msra.mxu0 0.0
    %203 = vmatprep.subr.mxu0 0.0
    %204 = vmatpush1.msra.mxu0 0.0
    %205 = vmatprep.subr.mxu0 0.0
    %206 = vmatpush1.msra.mxu0 0.0
    %207 = vmatprep.subr.mxu0 0.0
    %208 = vmatpush1.msra.mxu0 0.0
    %209 = vmatprep.subr.mxu0 0.0
    %210 = vmatpush1.msra.mxu0 0.0
    %211 = vmatprep.subr.mxu0 0.0
    %212 = vmatpush1.msra.mxu0 0.0
    %213 = vmatprep.subr.mxu0 0.0
    %214 = vmatpush1.msra.mxu0 0.0
    %215 = vmatprep.subr.mxu0 0.0
    %216 = vmatpush1.msra.mxu0 0.0
    %217 = vmatprep.subr.mxu0 0.0
    %218 = vmatpush1.msra.mxu0 0.0
    %219 = vmatprep.subr.mxu0 0.0
    %220 = vmatpush1.msra.mxu0 0.0
    %221 = vmatprep.subr.mxu0 0.0
    %222 = vmatpush1.msra.mxu0 0.0
    %223 = vmatprep.subr.mxu0 0.0
    %224 = vmatpush1.msra.mxu0 0.0
    %225 = vmatprep.subr.mxu0 0.0
    %226 = vmatpush1.msra.mxu0 0.0
    %227 = vmatprep.subr.mxu0 0.0
    %228 = vmatpush1.msra.mxu0 0.0
    %229 = vmatprep.subr.mxu0 0.0
    %230 = vmatpush1.msra.mxu0 0.0
    %231 = vmatprep.subr.mxu0 0.0
    %232 = vmatpush1.msra.mxu0 0.0
    %233 = vmatprep.subr.mxu0 0.0
    %234 = vmatpush1.msra.mxu0 0.0
    %235 = vmatprep.subr.mxu0 0.0
    %236 = vmatpush1.msra.mxu0 0.0
    %237 = vmatprep.subr.mxu0 0.0
    %238 = vmatpush1.msra.mxu0 0.0
    %239 = vmatprep.subr.mxu0 0.0
    %240 = vmatpush1.msra.mxu0 0.0
    %241 = vmatprep.subr.mxu0 0.0
    %242 = vmatpush1.msra.mxu0 0.0
    %243 = vmatprep.subr.mxu0 0.0
    %244 = vmatpush1.msra.mxu0 0.0
    %245 = vmatprep.subr.mxu0 0.0
    %246 = vmatpush1.msra.mxu0 0.0
    %247 = vmatprep.mubr.f32.mxu0 0.0
    %248 = vmatmul.mubr.f32.gmra.mrb[0].mxu0 %v181
    %v249 = vpop.f32.mrb[0].mxu0
    %v250 = vadd.f32 0.0, %v249
    %v251 = vpop.f32.mrb[0].mxu0
    %252 = vdwg.mxu0
    %253 = vst [vmem:[#allocation8] sm:$0xff] %v250
    // Predicated region
    $region26: #{mlp_forward.1} parent=1 // pred_check
      _
    $region27: #{mlp_forward.1} parent=1 // pred_check_branch
      %255 = sbr.rel (0) target = $region29
    $region28: #{mlp_forward.1} parent=1 // pred_region
      %s257 = ssub.s32 128, 128
      %258 = vsyncadd [#allocation4], %s257
      %s260 = sshll.u32 [#allocation8], 4
      %s261 = int_to_ptr.vmem [resolvable:$true] %s260
      %263 = dma.vmem_to_hbm [thread:$0]  %s261, 128, %s3, [#allocation4]
    $region29: #{mlp_forward.1} parent=1 // pred_fallthru
      _
    // Predicated region
    $region30: #{mlp_forward.1} parent=1 // pred_check
      _
    $region31: #{mlp_forward.1} parent=1 // pred_check_branch
      %265 = sbr.rel (0) target = $region33
    $region32: #{mlp_forward.1} parent=1 // pred_region
      %266 = dma.done [#allocation4], 128
    $region33: #{mlp_forward.1} parent=1 // pred_fallthru
      _
    %267 = vsyncpa [#allocation3], 1
    %268 = vsyncpa [#allocation6], 1
    %269 = vsyncpa [#allocation4], 1

</llo_original>
